<compile_context>
chip_gen: v7x
topology: tpu7x:2x2x1
jax: 0.10.0
libtpu: 0.0.40
codegen_flags: <defaults>
</compile_context>

<pallas_src>
import jax
import jax.numpy as jnp
from jax.experimental import pallas as pl
from jax.experimental.pallas import tpu as pltpu

IN_FEATURES = 100
OUT_FEATURES = 2

# Large batch tile (multiple of 8). 2048 rows * 100 feats * 4 B * 2 buffers
# ~= 1.6 MiB of VMEM -- comfortably inside the default scoped VMEM on
# v5e/v6e/v7x while being big enough to sit at the HBM roofline.
DEFAULT_TILE_B = 2048


def _round_up(x: int, m: int) -> int:
    return ((x + m - 1) // m) * m


def _linear_logsoftmax_kernel(x_ref, w_ref, b_ref, o_ref):
    # x_ref: (TILE_B, 100) f32, w_ref: (100, 2) f32, b_ref: (1, 2) f32,
    # o_ref: (TILE_B, 2) f32
    x = x_ref[...]
    w = w_ref[...]
    b = b_ref[...]

    # Linear: X @ W^T + b  (W already passed pre-transposed as (in, out)).
    logits = jnp.dot(x, w, preferred_element_type=jnp.float32) + b

    # Numerically-stable 2-class log-softmax, fully elementwise (no XLU
    # reductions over the 2-wide lane-padded axis):
    #   lse = max(a, b) + log1p(exp(-|a - b|))
    #   out = logits - lse
    a = logits[:, 0:1]
    c = logits[:, 1:2]
    m = jnp.maximum(a, c)
    lse = m + jnp.log1p(jnp.exp(-jnp.abs(a - c)))
    o_ref[...] = logits - lse


def my_module_forward(x, weight, bias, *, tile_b: int = DEFAULT_TILE_B):
    """Forward pass of MyModule.

    x:      (B, 100) f32
    weight: (2, 100) f32  (PyTorch nn.Linear layout)
    bias:   (2,)     f32
    returns (B, 2)   f32  log-probabilities
    """
    B = x.shape[0]

    # Adapt the tile to the batch: never bigger than the (8-rounded) batch.
    tile_b = max(8, min(tile_b, _round_up(B, 8)))
    B_pad = _round_up(B, tile_b)
    if B_pad != B:
        # Pad ragged batch tail with zeros; padded rows are sliced off below.
        x = jnp.pad(x, ((0, B_pad - B), (0, 0)))

    w_t = weight.T                           # (100, 2) so kernel does X @ W_t
    b2d = bias.reshape(1, OUT_FEATURES)      # keep 2D for TPU layout

    grid = (B_pad // tile_b,)

    out = pl.pallas_call(
        _linear_logsoftmax_kernel,
        out_shape=jax.ShapeDtypeStruct((B_pad, OUT_FEATURES), jnp.float32),
        grid=grid,
        in_specs=[
            # x: one batch tile per grid step (pipelined / double-buffered).
            pl.BlockSpec((tile_b, IN_FEATURES), lambda i: (i, 0)),
            # weight & bias: constant block index -> resident across steps.
            pl.BlockSpec((IN_FEATURES, OUT_FEATURES), lambda i: (0, 0)),
            pl.BlockSpec((1, OUT_FEATURES), lambda i: (0, 0)),
        ],
        out_specs=pl.BlockSpec((tile_b, OUT_FEATURES), lambda i: (i, 0)),
        compiler_params=pltpu.CompilerParams(
            # Batch axis is embarrassingly parallel -> lets v7x shard grid
            # steps across its two TensorCores.
            dimension_semantics=("parallel",),
        ),
    )(x, w_t, b2d)

    if B_pad != B:
        out = out[:B]
    return out


def _init_params(key):
    # Deterministic init mimicking nn.Linear default:
    # U(-1/sqrt(fan_in), 1/sqrt(fan_in))
    k_w, k_b = jax.random.split(key)
    bound = 1.0 / jnp.sqrt(jnp.float32(IN_FEATURES))
    weight = jax.random.uniform(
        k_w, (OUT_FEATURES, IN_FEATURES), jnp.float32, -bound, bound)
    bias = jax.random.uniform(
        k_b, (OUT_FEATURES,), jnp.float32, -bound, bound)
    return weight, bias


if __name__ == "__main__":
    key = jax.random.PRNGKey(0)
    k_x, k_p = jax.random.split(key)

    B = 8
    x = jax.random.normal(k_x, (B, IN_FEATURES), dtype=jnp.float32)
    weight, bias = _init_params(k_p)

    out = my_module_forward(x, weight, bias)
    out = jax.block_until_ready(out)

    # Sanity check against a pure-JAX reference.
    ref = jax.nn.log_softmax(x @ weight.T + bias, axis=-1)
    assert out.shape == (B, OUT_FEATURES)
    assert jnp.allclose(out, ref, atol=1e-5, rtol=1e-5)

    print("KERNEL_OK")
</pallas_src>

<mosaic_0001>
module attributes {stable_mosaic.version = 11 : i64} {
  func.func @_linear_logsoftmax_kernel(%arg0: i32, %arg1: memref<8x100xf32, #tpu.memory_space<vmem>>, %arg2: memref<100x2xf32, #tpu.memory_space<vmem>>, %arg3: memref<1x2xf32, #tpu.memory_space<vmem>>, %arg4: memref<8x2xf32, #tpu.memory_space<vmem>>) attributes {dimension_semantics = [#tpu.dimension_semantics<parallel>], iteration_bounds = array<i64: 1>, scalar_prefetch = 0 : i64, scratch_operands = 0 : i64, tpu.core_type = #tpu.core_type<tc>, window_params = [{transform_indices = @transform_0, window_bounds = array<i64: 8, 100>}, {pipeline_mode = #tpu.pipeline_mode<synchronous>, transform_indices = @transform_1, window_bounds = array<i64: 100, 2>}, {pipeline_mode = #tpu.pipeline_mode<synchronous>, transform_indices = @transform_2, window_bounds = array<i64: 1, 2>}, {transform_indices = @transform_3, window_bounds = array<i64: 8, 2>}]} {
    %c0 = arith.constant 0 : index
    %c0_0 = arith.constant 0 : index
    %0 = vector.load %arg1[%c0, %c0_0] : memref<8x100xf32, #tpu.memory_space<vmem>>, vector<8x100xf32>
    %c0_1 = arith.constant 0 : index
    %c0_2 = arith.constant 0 : index
    %1 = vector.load %arg2[%c0_1, %c0_2] : memref<100x2xf32, #tpu.memory_space<vmem>>, vector<100x2xf32>
    %c0_3 = arith.constant 0 : index
    %c0_4 = arith.constant 0 : index
    %2 = vector.load %arg3[%c0_3, %c0_4] : memref<1x2xf32, #tpu.memory_space<vmem>>, vector<1x2xf32>
    %cst = arith.constant dense<0.000000e+00> : vector<8x2xf32>
    %3 = tpu.matmul %0, %1, %cst {dimension_numbers = #tpu.dot_dimension_numbers<[1], [0], [0], [1], [0, 0, 1, 1], [], []>} : vector<8x100xf32>, vector<100x2xf32>, vector<8x2xf32> -> vector<8x2xf32>
    %4 = vector.broadcast %2 : vector<1x2xf32> to vector<8x2xf32>
    %5 = arith.addf %3, %4 : vector<8x2xf32>
    %6 = vector.extract_strided_slice %5 {offsets = [0, 0], sizes = [8, 1], strides = [1, 1]} : vector<8x2xf32> to vector<8x1xf32>
    %7 = vector.extract_strided_slice %5 {offsets = [0, 1], sizes = [8, 1], strides = [1, 1]} : vector<8x2xf32> to vector<8x1xf32>
    %8 = arith.maximumf %6, %7 : vector<8x1xf32>
    %9 = arith.subf %6, %7 : vector<8x1xf32>
    %10 = math.absf %9 : vector<8x1xf32>
    %cst_5 = arith.constant 0.000000e+00 : f32
    %11 = vector.broadcast %cst_5 : f32 to vector<8x1xf32>
    %12 = arith.subf %11, %10 : vector<8x1xf32>
    %13 = math.exp %12 : vector<8x1xf32>
    %14 = math.log1p %13 : vector<8x1xf32>
    %15 = arith.addf %8, %14 : vector<8x1xf32>
    %16 = vector.broadcast %15 : vector<8x1xf32> to vector<8x2xf32>
    %17 = arith.subf %5, %16 : vector<8x2xf32>
    %c0_6 = arith.constant 0 : index
    %c0_7 = arith.constant 0 : index
    %18 = vector.load %arg4[%c0_6, %c0_7] : memref<8x2xf32, #tpu.memory_space<vmem>>, vector<8x2xf32>
    tpu.vector_store %arg4[%c0_6, %c0_7], %17 {strides = array<i32>} : memref<8x2xf32, #tpu.memory_space<vmem>>, vector<8x2xf32>,
    return
  }
  func.func @transform_0(%arg0: i32) -> (i32, i32) {
    %c0_i32 = arith.constant 0 : i32
    %c0_i32_0 = arith.constant 0 : i32
    return %arg0, %c0_i32 : i32, i32
  }
  func.func @transform_1(%arg0: i32) -> (i32, i32) {
    %c0_i32 = arith.constant 0 : i32
    %c0_i32_0 = arith.constant 0 : i32
    %c0_i32_1 = arith.constant 0 : i32
    return %c0_i32, %c0_i32_0 : i32, i32
  }
  func.func @transform_2(%arg0: i32) -> (i32, i32) {
    %c0_i32 = arith.constant 0 : i32
    %c0_i32_0 = arith.constant 0 : i32
    %c0_i32_1 = arith.constant 0 : i32
    return %c0_i32, %c0_i32_0 : i32, i32
  }
  func.func @transform_3(%arg0: i32) -> (i32, i32) {
    %c0_i32 = arith.constant 0 : i32
    %c0_i32_0 = arith.constant 0 : i32
    return %arg0, %c0_i32 : i32, i32
  }
}

</mosaic_0001>

<llo_original>
// kernel: tpu_custom_call.1
$region0: #{tpu_custom_call.1}
  #allocation0 [shape = 'u32[]', space=smem, size = 0x4, offset = 0x4, fixed_abs, tag = 'smem constant byte address 0x4 - core index']
  #allocation1 [shape = 'u32[144,128]{1,0:T(1,128)}', space=vmem, size = 0x12000, scoped, tag = 'internal scratch']
  %s0 = inlined_call_operand.vmem [shape: f32[8,100], index: 0, kind: input, shape index: {}]
  %s1 = inlined_call_operand.vmem [shape: f32[100,2], index: 1, kind: input, shape index: {}]
  %s2 = inlined_call_operand.vmem [shape: f32[1,2], index: 2, kind: input, shape index: {}]
  %s3 = inlined_call_operand.vmem [shape: f32[8,2], index: 3, kind: output, shape index: {}]
  %s4 = sld [smem:[#allocation0]]
  $region22: #{tpu_custom_call.1} parent=0
    _
  %s6 = ssub.s32 1, %s4
  %s7 = scalar_select 0, %s6, %s4
  // Predicated region
  $region2: #{tpu_custom_call.1} parent=0 // pred_check
    _
  $region3: #{tpu_custom_call.1} parent=0 // pred_check_branch
    %9 = sbr.rel (0) target = $region5
  $region4: #{tpu_custom_call.1} parent=0 // pred_region
    _
  $region5: #{tpu_custom_call.1} parent=0 // pred_fallthru
    _
  // Predicated region
  $region6: #{tpu_custom_call.1} parent=0 // pred_check
    _
  $region7: #{tpu_custom_call.1} parent=0 // pred_check_branch
    %11 = sbr.rel (0) target = $region9
  $region8: #{tpu_custom_call.1} parent=0 // pred_region
    _
  $region9: #{tpu_custom_call.1} parent=0 // pred_fallthru
    _
  // Predicated region
  $region10: #{tpu_custom_call.1} parent=0 // pred_check
    _
  $region11: #{tpu_custom_call.1} parent=0 // pred_check_branch
    %13 = sbr.rel (0) target = $region13
  $region12: #{tpu_custom_call.1} parent=0 // pred_region
    _
  $region13: #{tpu_custom_call.1} parent=0 // pred_fallthru
    _
  %v14 = vld [vmem:[%s0] sm:$0xff]
  %v15 = vld [vmem:[%s1] sm:$0xff]
  %v16 = vld [vmem:[%s1 + $0x8] sm:$0xff]
  %v17 = vld [vmem:[%s1 + $0x10] sm:$0xff]
  %v18 = vld [vmem:[%s1 + $0x18] sm:$0xff]
  %v19 = vld [vmem:[%s1 + $0x20] sm:$0xff]
  %v20 = vld [vmem:[%s1 + $0x28] sm:$0xff]
  %v21 = vld [vmem:[%s1 + $0x30] sm:$0xff]
  %v22 = vld [vmem:[%s1 + $0x38] sm:$0xff]
  %v23 = vld [vmem:[%s1 + $0x40] sm:$0xff]
  %v24 = vld [vmem:[%s1 + $0x48] sm:$0xff]
  %v25 = vld [vmem:[%s1 + $0x50] sm:$0xff]
  %v26 = vld [vmem:[%s1 + $0x58] sm:$0xff]
  %v27 = vld [vmem:[%s1 + $0x60] sm:$0xf]
  %v28 = vld [vmem:[%s2] sm:$0x1]
  %v30 = vlaneseq
  %v31 = vshrl.u32 %v30, 7
  %v32 = vsub.s32 0, %v31
  %v33 = vrot.slane %v28, %v32
  %vm35 = vcmask 818176
  %v37 = vsel %vm35, %v14, 0
  %vm39 = vcmask 1043456
  %v41 = vsel %vm39, %v27, 0
  %43 = vmatprep.subr.mxu0 0.0
  %44 = vmatpush1.msra.mxu0 %v15
  %45 = vmatprep.subr.mxu0 0.0
  %46 = vmatpush1.msra.mxu0 %v16
  %47 = vmatprep.subr.mxu0 0.0
  %48 = vmatpush1.msra.mxu0 %v17
  %49 = vmatprep.subr.mxu0 0.0
  %50 = vmatpush1.msra.mxu0 %v18
  %51 = vmatprep.subr.mxu0 0.0
  %52 = vmatpush1.msra.mxu0 %v19
  %53 = vmatprep.subr.mxu0 0.0
  %54 = vmatpush1.msra.mxu0 %v20
  %55 = vmatprep.subr.mxu0 0.0
  %56 = vmatpush1.msra.mxu0 %v21
  %57 = vmatprep.subr.mxu0 0.0
  %58 = vmatpush1.msra.mxu0 %v22
  %59 = vmatprep.subr.mxu0 0.0
  %60 = vmatpush1.msra.mxu0 %v23
  %61 = vmatprep.subr.mxu0 0.0
  %62 = vmatpush1.msra.mxu0 %v24
  %63 = vmatprep.subr.mxu0 0.0
  %64 = vmatpush1.msra.mxu0 %v25
  %65 = vmatprep.subr.mxu0 0.0
  %66 = vmatpush1.msra.mxu0 %v26
  %67 = vmatprep.subr.mxu0 0.0
  %68 = vmatpush1.msra.mxu0 %v41
  %69 = vmatprep.subr.mxu0 0.0
  %70 = vmatpush1.msra.mxu0 0.0
  %71 = vmatprep.subr.mxu0 0.0
  %72 = vmatpush1.msra.mxu0 0.0
  %73 = vmatprep.subr.mxu0 0.0
  %74 = vmatpush1.msra.mxu0 0.0
  %75 = vmatprep.subr.mxu0 0.0
  %76 = vmatpush1.msra.mxu0 0.0
  %77 = vmatprep.subr.mxu0 0.0
  %78 = vmatpush1.msra.mxu0 0.0
  %79 = vmatprep.subr.mxu0 0.0
  %80 = vmatpush1.msra.mxu0 0.0
  %81 = vmatprep.subr.mxu0 0.0
  %82 = vmatpush1.msra.mxu0 0.0
  %83 = vmatprep.subr.mxu0 0.0
  %84 = vmatpush1.msra.mxu0 0.0
  %85 = vmatprep.subr.mxu0 0.0
  %86 = vmatpush1.msra.mxu0 0.0
  %87 = vmatprep.subr.mxu0 0.0
  %88 = vmatpush1.msra.mxu0 0.0
  %89 = vmatprep.subr.mxu0 0.0
  %90 = vmatpush1.msra.mxu0 0.0
  %91 = vmatprep.subr.mxu0 0.0
  %92 = vmatpush1.msra.mxu0 0.0
  %93 = vmatprep.subr.mxu0 0.0
  %94 = vmatpush1.msra.mxu0 0.0
  %95 = vmatprep.subr.mxu0 0.0
  %96 = vmatpush1.msra.mxu0 0.0
  %97 = vmatprep.subr.mxu0 0.0
  %98 = vmatpush1.msra.mxu0 0.0
  %99 = vmatprep.subr.mxu0 0.0
  %100 = vmatpush1.msra.mxu0 0.0
  %101 = vmatprep.subr.mxu0 0.0
  %102 = vmatpush1.msra.mxu0 0.0
  %103 = vmatprep.subr.mxu0 0.0
  %104 = vmatpush1.msra.mxu0 0.0
  %105 = vmatprep.subr.mxu0 0.0
  %106 = vmatpush1.msra.mxu0 0.0
  %107 = vmatprep.mubr.f32.mxu0 0.0
  %108 = vmatmul.mubr.f32.gmra.mrb[0].mxu0 %v37
  %v109 = vpop.f32.mrb[0].mxu0
  %v110 = vadd.f32 %v33, %v109
  %v111 = vpop.f32.mrb[0].mxu0
  %112 = vdwg.mxu0
  %114 = vrot.lane.b32.xlu0 %v110, 127
  %v115 = vpop.permute.xlu0 %114
  %v117 = vmax.f32 %v110, %v115
  %v118 = vsub.f32 %v110, %v115
  %v119 = vand.u32 2147483647, %v118
  %v120 = vsub.f32 0.0, %v119
  %v121 = vmul.f32 %v120, 1.442695
  %v122 = vpow.pop %v121
  %v123 = vadd.f32 %v122, 1.0
  %v124 = vlog2.pop %v123
  %v125 = vmul.f32 %v124, 0.6931472
  %v126 = vmul.f32 -0.5, %v122
  %v127 = vadd.f32 %v126, 1.0
  %v128 = vmul.f32 %v127, %v122
  %v129 = vand.u32 2147483647, %v122
  %vm130 = vcmp.lt.f32.partialorder %v129, 0.0004427343
  %v131 = vsel %vm130, %v128, %v125
  %v132 = vadd.f32 %v117, %v131
  %134 = vset.pattern.permute.xlu0 0
  %135 = vperm.xlu0 %134, %v132
  %v136 = vpop.permute.xlu0 %135
  %v138 = vsub.f32 %v110, %v136
  %vm139 = vcmask 15360
  %140 = vst.msk [vmem:[%s3] sm:$0xff] %vm139, %v138
  // Predicated region
  $region14: #{tpu_custom_call.1} parent=0 // pred_check
    _
  $region15: #{tpu_custom_call.1} parent=0 // pred_check_branch
    %142 = sbr.rel (0) target = $region17
  $region16: #{tpu_custom_call.1} parent=0 // pred_region
    _
  $region17: #{tpu_custom_call.1} parent=0 // pred_fallthru
    _
  // Predicated region
  $region18: #{tpu_custom_call.1} parent=0 // pred_check
    _
  $region19: #{tpu_custom_call.1} parent=0 // pred_check_branch
    %144 = sbr.rel (0) target = $region21
  $region20: #{tpu_custom_call.1} parent=0 // pred_region
    _
  $region21: #{tpu_custom_call.1} parent=0 // pred_fallthru
    _

</llo_original>
